<compile_context>
chip_gen: v7x
topology: tpu7x:2x2x1
jax: 0.10.0
libtpu: 0.0.40
codegen_flags: <defaults>
</compile_context>

<pallas_src>
import jax
import jax.numpy as jnp
from jax.experimental import pallas as pl
from jax.experimental.pallas import tpu as pltpu


def _round_up(n, m):
    return ((n + m - 1) // m) * m


def _residual_add_kernel(x_ref, w_ref, b_ref, o_ref):
    # x_ref: (TM, D) streamed row tile; w_ref: (D, D), b_ref: (1, D) resident.
    x = x_ref[...]                                                    # load once, reuse twice
    h = jnp.dot(x, w_ref[...], preferred_element_type=jnp.float32)   # MXU
    h = jax.nn.gelu(h + b_ref[...])                                   # VPU + EUP
    o_ref[...] = (h + x).astype(o_ref.dtype)                          # fused residual add


def residual_add(x, w, b, *, block_m=512):
    """out = gelu(x @ w + b) + x, fused.  x: (B, S, D); w: (D, D); b: (D,)."""
    B, S, D = x.shape
    M = B * S
    x2 = x.reshape(M, D)
    b2 = b.reshape(1, D)

    # Row tile: multiple of 8 sublanes, capped at block_m; pad rows so the
    # grid divides evenly (padded rows are discarded after the call).
    tm = min(block_m, _round_up(M, 8))
    m_pad = _round_up(M, tm)
    if m_pad != M:
        x2 = jnp.pad(x2, ((0, m_pad - M), (0, 0)))
    grid = (m_pad // tm,)

    itemsize = jnp.dtype(x.dtype).itemsize
    cost = pl.CostEstimate(
        flops=2 * m_pad * D * D + 3 * m_pad * D,
        transcendentals=m_pad * D,
        bytes_accessed=(2 * m_pad * D + D * D + D) * itemsize,
    )

    # VMEM budget: x & out double-buffered tiles + resident W + b (+ margin),
    # capped safely below the smallest physical VMEM (v7x: 64 MiB / core).
    vmem_needed = (2 * 2 * tm * D + D * D + 2 * D) * 4
    vmem_limit = int(min(max(2 * vmem_needed, 32 << 20), 60 << 20))

    out = pl.pallas_call(
        _residual_add_kernel,
        out_shape=jax.ShapeDtypeStruct((m_pad, D), x.dtype),
        grid_spec=pltpu.PrefetchScalarGridSpec(
            num_scalar_prefetch=0,
            grid=grid,
            in_specs=[
                pl.BlockSpec((tm, D), lambda i: (i, 0)),   # x: streamed row tiles
                pl.BlockSpec((D, D), lambda i: (0, 0)),    # W: VMEM-resident
                pl.BlockSpec((1, D), lambda i: (0, 0)),    # b: VMEM-resident
            ],
            out_specs=pl.BlockSpec((tm, D), lambda i: (i, 0)),
        ),
        compiler_params=pltpu.CompilerParams(
            dimension_semantics=("parallel",),
            vmem_limit_bytes=vmem_limit,
        ),
        input_output_aliases={0: 0},   # mirror in-place `x += res`
        cost_estimate=cost,
    )(x2, w, b2)

    return out[:M].reshape(B, S, D)


def residual_add_ref(x, w, b):
    h = jax.nn.gelu(jnp.einsum("bsd,de->bse", x, w) + b)
    return h + x


if __name__ == "__main__":
    key = jax.random.PRNGKey(0)
    kx, kw, kb = jax.random.split(key, 3)

    # Small but lane-dense shapes: hidden = 128 fills all lanes (unmasked
    # stores, full MXU width).
    B, S, D = 2, 8, 128
    x = jax.random.normal(kx, (B, S, D), dtype=jnp.float32)
    w = jax.random.normal(kw, (D, D), dtype=jnp.float32) * 0.05
    b = jax.random.normal(kb, (D,), dtype=jnp.float32) * 0.05

    # Reference BEFORE the kernel (kernel aliases its padded/copied input).
    y_ref = residual_add_ref(x, w, b)
    y = residual_add(x, w, b)
    jax.block_until_ready(y)
    assert y.shape == x.shape
    assert jnp.allclose(y, y_ref, atol=1e-3, rtol=1e-3), "mismatch vs reference (small)"

    # Second check: exercises real row tiling (grid > 1) and row padding.
    B2, S2, D2 = 4, 300, 256
    xb = jax.random.normal(kx, (B2, S2, D2), dtype=jnp.float32)
    wb = jax.random.normal(kw, (D2, D2), dtype=jnp.float32) * 0.02
    bb = jax.random.normal(kb, (D2,), dtype=jnp.float32) * 0.02
    yb_ref = residual_add_ref(xb, wb, bb)
    yb = residual_add(xb, wb, bb)
    jax.block_until_ready(yb)
    assert yb.shape == xb.shape
    assert jnp.allclose(yb, yb_ref, atol=1e-2, rtol=1e-2), "mismatch vs reference (tiled)"

    print("KERNEL_OK")
</pallas_src>

<mosaic_0001>
module attributes {stable_mosaic.version = 11 : i64} {
  func.func @_residual_add_kernel(%arg0: i32, %arg1: memref<16x128xf32, #tpu.memory_space<vmem>>, %arg2: memref<128x128xf32, #tpu.memory_space<vmem>>, %arg3: memref<1x128xf32, #tpu.memory_space<vmem>>, %arg4: memref<16x128xf32, #tpu.memory_space<vmem>>) attributes {dimension_semantics = [#tpu.dimension_semantics<parallel>], iteration_bounds = array<i64: 1>, scalar_prefetch = 0 : i64, scratch_operands = 0 : i64, tpu.core_type = #tpu.core_type<tc>, window_params = [{transform_indices = @transform_0, window_bounds = array<i64: 16, 128>}, {pipeline_mode = #tpu.pipeline_mode<synchronous>, transform_indices = @transform_1, window_bounds = array<i64: 128, 128>}, {pipeline_mode = #tpu.pipeline_mode<synchronous>, transform_indices = @transform_2, window_bounds = array<i64: 1, 128>}, {transform_indices = @transform_3, window_bounds = array<i64: 16, 128>}]} {
    %c0 = arith.constant 0 : index
    %c0_0 = arith.constant 0 : index
    %0 = vector.load %arg1[%c0, %c0_0] : memref<16x128xf32, #tpu.memory_space<vmem>>, vector<16x128xf32>
    %c0_1 = arith.constant 0 : index
    %c0_2 = arith.constant 0 : index
    %1 = vector.load %arg2[%c0_1, %c0_2] : memref<128x128xf32, #tpu.memory_space<vmem>>, vector<128x128xf32>
    %cst = arith.constant dense<0.000000e+00> : vector<16x128xf32>
    %2 = tpu.matmul %0, %1, %cst {dimension_numbers = #tpu.dot_dimension_numbers<[1], [0], [0], [1], [0, 0, 1, 1], [], []>} : vector<16x128xf32>, vector<128x128xf32>, vector<16x128xf32> -> vector<16x128xf32>
    %c0_3 = arith.constant 0 : index
    %c0_4 = arith.constant 0 : index
    %3 = vector.load %arg3[%c0_3, %c0_4] : memref<1x128xf32, #tpu.memory_space<vmem>>, vector<1x128xf32>
    %4 = vector.broadcast %3 : vector<1x128xf32> to vector<16x128xf32>
    %5 = arith.addf %2, %4 : vector<16x128xf32>
    %6 = arith.mulf %5, %5 : vector<16x128xf32>
    %7 = arith.mulf %5, %6 : vector<16x128xf32>
    %cst_5 = arith.constant 4.471500e-02 : f32
    %8 = vector.broadcast %cst_5 : f32 to vector<16x128xf32>
    %9 = arith.mulf %8, %7 : vector<16x128xf32>
    %10 = arith.addf %5, %9 : vector<16x128xf32>
    %cst_6 = arith.constant 0.797884583 : f32
    %11 = vector.broadcast %cst_6 : f32 to vector<16x128xf32>
    %12 = arith.mulf %11, %10 : vector<16x128xf32>
    %13 = math.tanh %12 : vector<16x128xf32>
    %cst_7 = arith.constant 1.000000e+00 : f32
    %14 = vector.broadcast %cst_7 : f32 to vector<16x128xf32>
    %15 = arith.addf %14, %13 : vector<16x128xf32>
    %cst_8 = arith.constant 5.000000e-01 : f32
    %16 = vector.broadcast %cst_8 : f32 to vector<16x128xf32>
    %17 = arith.mulf %16, %15 : vector<16x128xf32>
    %18 = arith.mulf %5, %17 : vector<16x128xf32>
    %19 = arith.addf %18, %0 : vector<16x128xf32>
    %c0_9 = arith.constant 0 : index
    %c0_10 = arith.constant 0 : index
    %20 = vector.load %arg4[%c0_9, %c0_10] : memref<16x128xf32, #tpu.memory_space<vmem>>, vector<16x128xf32>
    tpu.vector_store %arg4[%c0_9, %c0_10], %19 {strides = array<i32>} : memref<16x128xf32, #tpu.memory_space<vmem>>, vector<16x128xf32>,
    return
  }
  func.func @transform_0(%arg0: i32) -> (i32, i32) {
    %c0_i32 = arith.constant 0 : i32
    %c0_i32_0 = arith.constant 0 : i32
    return %arg0, %c0_i32 : i32, i32
  }
  func.func @transform_1(%arg0: i32) -> (i32, i32) {
    %c0_i32 = arith.constant 0 : i32
    %c0_i32_0 = arith.constant 0 : i32
    %c0_i32_1 = arith.constant 0 : i32
    return %c0_i32, %c0_i32_0 : i32, i32
  }
  func.func @transform_2(%arg0: i32) -> (i32, i32) {
    %c0_i32 = arith.constant 0 : i32
    %c0_i32_0 = arith.constant 0 : i32
    %c0_i32_1 = arith.constant 0 : i32
    return %c0_i32, %c0_i32_0 : i32, i32
  }
  func.func @transform_3(%arg0: i32) -> (i32, i32) {
    %c0_i32 = arith.constant 0 : i32
    %c0_i32_0 = arith.constant 0 : i32
    return %arg0, %c0_i32 : i32, i32
  }
}

</mosaic_0001>

<llo_original>
// kernel: tpu_custom_call.1
$region0: #{tpu_custom_call.1}
  #allocation0 [shape = 'u32[]', space=smem, size = 0x4, offset = 0x4, fixed_abs, tag = 'smem constant byte address 0x4 - core index']
  #allocation1 [shape = 'u32[144,128]{1,0:T(1,128)}', space=vmem, size = 0x12000, scoped, tag = 'internal scratch']
  %s0 = inlined_call_operand.hbm [shape: f32[16,128], index: 0, kind: input, shape index: {}, may-alias: {0,3}]
  %s1 = inlined_call_operand.hbm [shape: f32[128,128], index: 1, kind: input, shape index: {}]
  %s2 = inlined_call_operand.vmem [shape: f32[1,128], index: 2, kind: input, shape index: {}]
  %s3 = inlined_call_operand.hbm [shape: f32[16,128], index: 3, kind: output, shape index: {}, may-alias: {0,3}]
  %s4 = sld [smem:[#allocation0]]
  $region30: #{tpu_custom_call.1} parent=0
    _
  %s6 = ssub.s32 1, %s4
  %s7 = scalar_select 0, %s6, %s4
  $region1: #{tpu_custom_call.1} parent=0
    #allocation2 [shape = 'u8[8192]{0}', space=vmem, size = 0x2000, scoped, tag = 'input window, operand 0, single buffered']
    #allocation3 [shape = 's32[1]{0}', space=sflag, size = 0x4, scoped, tag = 'scoped memory for tpu_custom_call.1']
    #allocation4 [shape = 's32[1]{0}', space=sflag, size = 0x4, scoped, tag = 'scoped memory for tpu_custom_call.1']
    #allocation5 [shape = 'u8[65536]{0}', space=vmem, size = 0x10000, scoped, tag = 'input window, operand 1, single buffered']
    #allocation6 [shape = 's32[1]{0}', space=sflag, size = 0x4, scoped, tag = 'scoped memory for tpu_custom_call.1']
    #allocation7 [shape = 'u8[8192]{0}', space=vmem, size = 0x2000, scoped, tag = 'output window, operand 0, single buffered']
    %8 = vsyncpa [#allocation3], 0
    %9 = vsyncpa [#allocation6], 0
    %10 = vsyncpa [#allocation4], 0
    // Predicated region
    $region2: #{tpu_custom_call.1} parent=1 // pred_check
      _
    $region3: #{tpu_custom_call.1} parent=1 // pred_check_branch
      %12 = sbr.rel (0) target = $region5
    $region4: #{tpu_custom_call.1} parent=1 // pred_region
      %s14 = ssub.s32 256, 256
      %15 = vsyncadd [#allocation3], %s14
      %s16 = sshll.u32 [#allocation2], 4
      %s17 = int_to_ptr.vmem [resolvable:$true] %s16
      %22 = dma.hbm_to_vmem [thread:$0]  %s0, 256, %s17, [#allocation3], 128, 128, 8
    $region5: #{tpu_custom_call.1} parent=1 // pred_fallthru
      _
    // Predicated region
    $region6: #{tpu_custom_call.1} parent=1 // pred_check
      _
    $region7: #{tpu_custom_call.1} parent=1 // pred_check_branch
      %24 = sbr.rel (0) target = $region9
    $region8: #{tpu_custom_call.1} parent=1 // pred_region
      %s26 = ssub.s32 2048, 2048
      %27 = vsyncadd [#allocation6], %s26
      %s28 = sshll.u32 [#allocation5], 4
      %s29 = int_to_ptr.vmem [resolvable:$true] %s28
      %34 = dma.hbm_to_vmem [thread:$0]  %s1, 2048, %s29, [#allocation6], 128, 128, 8
    $region9: #{tpu_custom_call.1} parent=1 // pred_fallthru
      _
    // Predicated region
    $region10: #{tpu_custom_call.1} parent=1 // pred_check
      _
    $region11: #{tpu_custom_call.1} parent=1 // pred_check_branch
      %36 = sbr.rel (0) target = $region13
    $region12: #{tpu_custom_call.1} parent=1 // pred_region
      _
    $region13: #{tpu_custom_call.1} parent=1 // pred_fallthru
      _
    // Predicated region
    $region14: #{tpu_custom_call.1} parent=1 // pred_check
      _
    $region15: #{tpu_custom_call.1} parent=1 // pred_check_branch
      %38 = sbr.rel (0) target = $region17
    $region16: #{tpu_custom_call.1} parent=1 // pred_region
      %39 = dma.done [#allocation3], 256
    $region17: #{tpu_custom_call.1} parent=1 // pred_fallthru
      _
    // Predicated region
    $region18: #{tpu_custom_call.1} parent=1 // pred_check
      _
    $region19: #{tpu_custom_call.1} parent=1 // pred_check_branch
      %41 = sbr.rel (0) target = $region21
    $region20: #{tpu_custom_call.1} parent=1 // pred_region
      %42 = dma.done [#allocation6], 2048
    $region21: #{tpu_custom_call.1} parent=1 // pred_fallthru
      _
    %v43 = vld [vmem:[#allocation2] sm:$0xff]
    %v44 = vld [vmem:[#allocation2 + $0x8] sm:$0xff]
    %v45 = vld [vmem:[#allocation5] sm:$0xff]
    %v46 = vld [vmem:[#allocation5 + $0x8] sm:$0xff]
    %v47 = vld [vmem:[#allocation5 + $0x10] sm:$0xff]
    %v48 = vld [vmem:[#allocation5 + $0x18] sm:$0xff]
    %v49 = vld [vmem:[#allocation5 + $0x20] sm:$0xff]
    %v50 = vld [vmem:[#allocation5 + $0x28] sm:$0xff]
    %v51 = vld [vmem:[#allocation5 + $0x30] sm:$0xff]
    %v52 = vld [vmem:[#allocation5 + $0x38] sm:$0xff]
    %v53 = vld [vmem:[#allocation5 + $0x40] sm:$0xff]
    %v54 = vld [vmem:[#allocation5 + $0x48] sm:$0xff]
    %v55 = vld [vmem:[#allocation5 + $0x50] sm:$0xff]
    %v56 = vld [vmem:[#allocation5 + $0x58] sm:$0xff]
    %v57 = vld [vmem:[#allocation5 + $0x60] sm:$0xff]
    %v58 = vld [vmem:[#allocation5 + $0x68] sm:$0xff]
    %v59 = vld [vmem:[#allocation5 + $0x70] sm:$0xff]
    %v60 = vld [vmem:[#allocation5 + $0x78] sm:$0xff]
    %v61 = vld [vmem:[%s2] sm:$0x1]
    %v63 = vlaneseq
    %v64 = vshrl.u32 %v63, 7
    %v65 = vsub.s32 0, %v64
    %v66 = vrot.slane %v61, %v65
    %68 = vmatprep.subr.mxu0 0.0
    %69 = vmatpush1.msra.mxu0 %v45
    %70 = vmatprep.subr.mxu0 0.0
    %71 = vmatpush1.msra.mxu0 %v46
    %72 = vmatprep.subr.mxu0 0.0
    %73 = vmatpush1.msra.mxu0 %v47
    %74 = vmatprep.subr.mxu0 0.0
    %75 = vmatpush1.msra.mxu0 %v48
    %76 = vmatprep.subr.mxu0 0.0
    %77 = vmatpush1.msra.mxu0 %v49
    %78 = vmatprep.subr.mxu0 0.0
    %79 = vmatpush1.msra.mxu0 %v50
    %80 = vmatprep.subr.mxu0 0.0
    %81 = vmatpush1.msra.mxu0 %v51
    %82 = vmatprep.subr.mxu0 0.0
    %83 = vmatpush1.msra.mxu0 %v52
    %84 = vmatprep.subr.mxu0 0.0
    %85 = vmatpush1.msra.mxu0 %v53
    %86 = vmatprep.subr.mxu0 0.0
    %87 = vmatpush1.msra.mxu0 %v54
    %88 = vmatprep.subr.mxu0 0.0
    %89 = vmatpush1.msra.mxu0 %v55
    %90 = vmatprep.subr.mxu0 0.0
    %91 = vmatpush1.msra.mxu0 %v56
    %92 = vmatprep.subr.mxu0 0.0
    %93 = vmatpush1.msra.mxu0 %v57
    %94 = vmatprep.subr.mxu0 0.0
    %95 = vmatpush1.msra.mxu0 %v58
    %96 = vmatprep.subr.mxu0 0.0
    %97 = vmatpush1.msra.mxu0 %v59
    %98 = vmatprep.subr.mxu0 0.0
    %99 = vmatpush1.msra.mxu0 %v60
    %100 = vmatprep.subr.mxu0 0.0
    %101 = vmatpush1.msra.mxu0 0.0
    %102 = vmatprep.subr.mxu0 0.0
    %103 = vmatpush1.msra.mxu0 0.0
    %104 = vmatprep.subr.mxu0 0.0
    %105 = vmatpush1.msra.mxu0 0.0
    %106 = vmatprep.subr.mxu0 0.0
    %107 = vmatpush1.msra.mxu0 0.0
    %108 = vmatprep.subr.mxu0 0.0
    %109 = vmatpush1.msra.mxu0 0.0
    %110 = vmatprep.subr.mxu0 0.0
    %111 = vmatpush1.msra.mxu0 0.0
    %112 = vmatprep.subr.mxu0 0.0
    %113 = vmatpush1.msra.mxu0 0.0
    %114 = vmatprep.subr.mxu0 0.0
    %115 = vmatpush1.msra.mxu0 0.0
    %116 = vmatprep.subr.mxu0 0.0
    %117 = vmatpush1.msra.mxu0 0.0
    %118 = vmatprep.subr.mxu0 0.0
    %119 = vmatpush1.msra.mxu0 0.0
    %120 = vmatprep.subr.mxu0 0.0
    %121 = vmatpush1.msra.mxu0 0.0
    %122 = vmatprep.subr.mxu0 0.0
    %123 = vmatpush1.msra.mxu0 0.0
    %124 = vmatprep.subr.mxu0 0.0
    %125 = vmatpush1.msra.mxu0 0.0
    %126 = vmatprep.subr.mxu0 0.0
    %127 = vmatpush1.msra.mxu0 0.0
    %128 = vmatprep.subr.mxu0 0.0
    %129 = vmatpush1.msra.mxu0 0.0
    %130 = vmatprep.subr.mxu0 0.0
    %131 = vmatpush1.msra.mxu0 0.0
    %132 = vmatprep.mubr.f32.mxu0 0.0
    %133 = vmatmul.mubr.f32.gmra.mrb[0].mxu0 %v43
    %v134 = vpop.f32.mrb[0].mxu0
    %v135 = vadd.f32 %v66, %v134
    %v136 = vpop.f32.mrb[0].mxu0
    %137 = vmatprep.mubr.f32.mxu0 0.0
    %138 = vmatmul.mubr.f32.gmra.mrb[0].mxu0 %v44
    %v139 = vpop.f32.mrb[0].mxu0
    %v140 = vadd.f32 %v66, %v139
    %v141 = vpop.f32.mrb[0].mxu0
    %142 = vdwg.mxu0
    %v143 = vmul.f32 %v135, %v135
    %v144 = vmul.f32 %v140, %v140
    %v145 = vmul.f32 %v135, %v143
    %v146 = vmul.f32 %v140, %v144
    %v147 = vmul.f32 %v145, 0.044715
    %v148 = vmul.f32 %v146, 0.044715
    %v149 = vadd.f32 %v135, %v147
    %v150 = vadd.f32 %v140, %v148
    %v151 = vmul.f32 %v149, 0.7978846
    %v152 = vmul.f32 %v150, 0.7978846
    %v153 = vtanh.pop %v151
    %v154 = vtanh.pop %v152
    %v155 = vadd.f32 %v153, 1.0
    %v156 = vadd.f32 %v154, 1.0
    %v157 = vmul.f32 %v155, 0.5
    %v158 = vmul.f32 %v156, 0.5
    %v159 = vmul.f32 %v135, %v157
    %v160 = vmul.f32 %v140, %v158
    %v161 = vadd.f32 %v159, %v43
    %v162 = vadd.f32 %v160, %v44
    %163 = vst [vmem:[#allocation7] sm:$0xff] %v161
    %164 = vst [vmem:[#allocation7 + $0x8] sm:$0xff] %v162
    // Predicated region
    $region22: #{tpu_custom_call.1} parent=1 // pred_check
      _
    $region23: #{tpu_custom_call.1} parent=1 // pred_check_branch
      %166 = sbr.rel (0) target = $region25
    $region24: #{tpu_custom_call.1} parent=1 // pred_region
      %s168 = ssub.s32 256, 256
      %169 = vsyncadd [#allocation4], %s168
      %s170 = sshll.u32 [#allocation7], 4
      %s171 = int_to_ptr.vmem [resolvable:$true] %s170
      %176 = dma.vmem_to_hbm [thread:$0]  %s171, 256, %s3, [#allocation4], 128, 128, 8
    $region25: #{tpu_custom_call.1} parent=1 // pred_fallthru
      _
    // Predicated region
    $region26: #{tpu_custom_call.1} parent=1 // pred_check
      _
    $region27: #{tpu_custom_call.1} parent=1 // pred_check_branch
      %178 = sbr.rel (0) target = $region29
    $region28: #{tpu_custom_call.1} parent=1 // pred_region
      %179 = dma.done [#allocation4], 256
    $region29: #{tpu_custom_call.1} parent=1 // pred_fallthru
      _
    %180 = vsyncpa [#allocation3], 1
    %181 = vsyncpa [#allocation6], 1
    %182 = vsyncpa [#allocation4], 1

</llo_original>
